<compile_context>
chip_gen: v7x
topology: tpu7x:2x2x1
jax: 0.10.0
libtpu: 0.0.40
codegen_flags: <defaults>
</compile_context>

<pallas_src>
import jax
import jax.numpy as jnp
from jax.experimental import pallas as pl
from jax.experimental.pallas import tpu as pltpu


def shift_conv_kernel(x_ref, w_ref, o_ref):
    # x_ref/o_ref: (T, F_t) blocks; w_ref: (3, F_t) f32 per-element taps.
    T = x_ref.shape[0]
    x = x_ref[...].astype(jnp.float32)               # f32 accumulation on every generation
    w = w_ref[...]
    w0, w1, w2 = w[0:1, :], w[1:2, :], w[2:3, :]      # (1, F_t): cheap sublane broadcast

    # PyTorch Conv1d is cross-correlation with zero padding along T:
    #   out[t] = w0 * x[t-1] + w1 * x[t] + w2 * x[t+1]
    prev = pltpu.roll(x, shift=1, axis=0)             # prev[t] = x[t-1] (row 0 wraps)
    nxt = pltpu.roll(x, shift=T - 1, axis=0)          # nxt[t]  = x[t+1] (row T-1 wraps)
    t_idx = jax.lax.broadcasted_iota(jnp.int32, x.shape, 0)
    prev = jnp.where(t_idx == 0, 0.0, prev)           # zero-pad at t = -1
    nxt = jnp.where(t_idx == T - 1, 0.0, nxt)         # zero-pad at t = T

    o_ref[...] = (w1 * x + w0 * prev + w2 * nxt).astype(o_ref.dtype)


def _vmem_limit_bytes():
    """Per-generation scoped-VMEM budget: ~3/4 of physical capacity, capped at 64 MiB."""
    cap = None
    try:
        cap = getattr(pltpu.get_tpu_info(), "vmem_capacity_bytes", None)
    except Exception:
        cap = None
    if not cap:
        return 32 * 1024 * 1024            # conservative fallback, fits every generation
    return min((cap * 3) // 4, 64 * 1024 * 1024)


def _choose_flat_tile(T, F, n_batch, itemsize, vmem_limit_bytes):
    """Pick the lane-axis tile so the pipelined footprint fits the VMEM budget.

    Footprint per flat-axis element:
      * double-buffered input + output blocks            : 2*2 * T * itemsize
      * double-buffered f32 weight block (3 taps)        : 2*3 * 4
      * in-kernel f32 temporaries (x, rolled copies, ...): ~6 * T * 4
    """
    per_elem = 4 * T * itemsize + 6 * T * 4 + 6 * 4
    budget = int(vmem_limit_bytes * 0.75)
    tile = max(budget // per_elem, 128)
    tile = (tile // 128) * 128             # lane-dense tiles (multiple of 128)
    if tile >= F:
        tile = F                           # the full axis is always a legal block extent
    # Keep >= ~8 grid steps so adjacent-step DMAs overlap and the all-parallel grid can
    # be split across both TensorCores on v7x.
    while n_batch * pl.cdiv(F, tile) < 8 and tile >= 256 and tile % 256 == 0:
        tile //= 2
    return tile


def shift_module_forward(x, conv_weight, n_segment=8, flat_tile=None):
    """x: (nt, C, H, W) NCHW; conv_weight: (C, 1, 3) depthwise Conv1d weight."""
    nt, c, h, w = x.shape
    assert nt % n_segment == 0
    n_batch = nt // n_segment
    hw = h * w
    F = c * hw

    # (nt, C, H, W) -> (n_batch, T, C*H*W): pure reshape (no HBM transpose).  The temporal
    # conv is independent per (c, h, w) location, so channel+spatial flatten onto lanes.
    xr = x.reshape(n_batch, n_segment, F)

    # Per-element taps: wr[k, ch*HW + s] = conv_weight[ch, 0, k], kept in f32.
    w3 = conv_weight.reshape(c, 3).astype(jnp.float32)
    wr = jnp.repeat(jnp.transpose(w3, (1, 0)), hw, axis=1)        # (3, F)

    vmem_limit = _vmem_limit_bytes()
    tile = flat_tile if flat_tile is not None else _choose_flat_tile(
        n_segment, F, n_batch, x.dtype.itemsize, vmem_limit)
    grid = (pl.cdiv(F, tile), n_batch)     # flat-tile outer: weight block reused across batch

    cost = pl.CostEstimate(
        flops=5 * nt * F,                                          # 3 mults + 2 adds / elem
        transcendentals=0,
        bytes_accessed=2 * nt * F * x.dtype.itemsize + wr.size * 4,
    )

    out = pl.pallas_call(
        shift_conv_kernel,
        out_shape=jax.ShapeDtypeStruct((n_batch, n_segment, F), x.dtype),
        grid_spec=pltpu.PrefetchScalarGridSpec(
            num_scalar_prefetch=0,
            grid=grid,
            in_specs=[
                pl.BlockSpec((pl.Squeezed(), n_segment, tile), lambda f, b: (b, 0, f)),
                pl.BlockSpec((3, tile), lambda f, b: (0, f)),
            ],
            out_specs=pl.BlockSpec((pl.Squeezed(), n_segment, tile), lambda f, b: (b, 0, f)),
        ),
        compiler_params=pltpu.CompilerParams(
            dimension_semantics=("parallel", "parallel"),
            vmem_limit_bytes=vmem_limit,
        ),
        cost_estimate=cost,
    )(xr, wr)

    return out.reshape(nt, c, h, w)


def make_shift_weight(input_channels, n_div=8, mode="shift"):
    """Deterministic weight init mirroring ShiftModule.__init__ (Conv1d weight (C,1,3))."""
    c = input_channels
    fold = c // n_div
    w = jnp.zeros((c, 1, 3), jnp.float32)
    if mode == "shift":
        w = w.at[:fold, 0, 2].set(1.0)
        w = w.at[fold:2 * fold, 0, 0].set(1.0)
        if 2 * fold < c:
            w = w.at[2 * fold:, 0, 1].set(1.0)
    elif mode == "fixed":
        w = w.at[:, 0, 1].set(1.0)
    else:  # 'norm' mode: trainable random init; deterministic values here
        w = jax.random.normal(jax.random.PRNGKey(1), (c, 1, 3), jnp.float32) * 0.1
    return w


def ref_forward(x, conv_weight, n_segment):
    """Pure-JAX reference of ShiftModule.forward for verification."""
    nt, c, h, w = x.shape
    n_batch = nt // n_segment
    xv = x.reshape(n_batch, n_segment, c, h, w)
    w3 = conv_weight.reshape(c, 3)
    xpad = jnp.pad(xv, ((0, 0), (1, 1), (0, 0), (0, 0), (0, 0)))
    out = (w3[:, 0][None, None, :, None, None] * xpad[:, :-2]
           + w3[:, 1][None, None, :, None, None] * xpad[:, 1:-1]
           + w3[:, 2][None, None, :, None, None] * xpad[:, 2:])
    return out.reshape(nt, c, h, w)


if __name__ == "__main__":
    n_segment = 8
    n_batch = 2
    nt = n_batch * n_segment

    key = jax.random.PRNGKey(0)
    k1, k2, k3 = jax.random.split(key, 3)

    # Check 1: canonical 'shift' weights, auto-tiled lane-dense path, f32.
    c, h, w = 8, 16, 16
    x = jax.random.normal(k1, (nt, c, h, w), dtype=jnp.float32)
    conv_weight = make_shift_weight(c, n_div=8, mode="shift")
    y = jax.block_until_ready(shift_module_forward(x, conv_weight, n_segment=n_segment))
    y_ref = ref_forward(x, conv_weight, n_segment)
    assert y.shape == (nt, c, h, w)
    assert jnp.allclose(y, y_ref, atol=1e-5, rtol=1e-5), "mismatch vs reference (shift)"

    # Check 2: dense 'norm' weights with a forced small flat tile (384) to exercise the
    # multi-tile grid and the masked partial edge block (16*32*32 = 16384, 16384 % 384 != 0).
    c2, h2, w2 = 16, 32, 32
    x2 = jax.random.normal(k2, (nt, c2, h2, w2), dtype=jnp.float32)
    conv_weight2 = make_shift_weight(c2, n_div=8, mode="norm")
    y2 = jax.block_until_ready(
        shift_module_forward(x2, conv_weight2, n_segment=n_segment, flat_tile=384))
    y2_ref = ref_forward(x2, conv_weight2, n_segment)
    assert jnp.allclose(y2, y2_ref, atol=1e-5, rtol=1e-5), "mismatch vs reference (tiled)"

    # Check 3: bf16 input — f32 in-kernel accumulation, cast only at the store.
    x3 = jax.random.normal(k3, (nt, c, h, w), dtype=jnp.float32).astype(jnp.bfloat16)
    y3 = jax.block_until_ready(shift_module_forward(x3, conv_weight, n_segment=n_segment))
    y3_ref = ref_forward(x3.astype(jnp.float32), conv_weight, n_segment).astype(jnp.bfloat16)
    assert jnp.allclose(y3.astype(jnp.float32), y3_ref.astype(jnp.float32),
                        atol=2e-2, rtol=2e-2), "mismatch vs reference (bf16)"

    print("KERNEL_OK")
</pallas_src>

<mosaic_0001>
module attributes {stable_mosaic.version = 11 : i64} {
  func.func @shift_conv_kernel(%arg0: i32, %arg1: i32, %arg2: memref<1x8x512xf32, #tpu.memory_space<vmem>>, %arg3: memref<3x512xf32, #tpu.memory_space<vmem>>, %arg4: memref<1x8x512xf32, #tpu.memory_space<vmem>>) attributes {dimension_semantics = [#tpu.dimension_semantics<parallel>, #tpu.dimension_semantics<parallel>], iteration_bounds = array<i64: 4, 2>, scalar_prefetch = 0 : i64, scratch_operands = 0 : i64, tpu.core_type = #tpu.core_type<tc>, window_params = [{transform_indices = @transform_0, window_bounds = array<i64: 1, 8, 512>}, {transform_indices = @transform_1, window_bounds = array<i64: 3, 512>}, {transform_indices = @transform_2, window_bounds = array<i64: 1, 8, 512>}]} {
    %c0 = arith.constant 0 : index
    %c0_0 = arith.constant 0 : index
    %c0_1 = arith.constant 0 : index
    %0 = vector.load %arg2[%c0, %c0_0, %c0_1] : memref<1x8x512xf32, #tpu.memory_space<vmem>>, vector<1x8x512xf32>
    %1 = vector.shape_cast %0 : vector<1x8x512xf32> to vector<8x512xf32>
    %c0_2 = arith.constant 0 : index
    %c0_3 = arith.constant 0 : index
    %2 = vector.load %arg3[%c0_2, %c0_3] : memref<3x512xf32, #tpu.memory_space<vmem>>, vector<3x512xf32>
    %3 = vector.extract_strided_slice %2 {offsets = [0, 0], sizes = [1, 512], strides = [1, 1]} : vector<3x512xf32> to vector<1x512xf32>
    %4 = vector.extract_strided_slice %2 {offsets = [1, 0], sizes = [1, 512], strides = [1, 1]} : vector<3x512xf32> to vector<1x512xf32>
    %5 = vector.extract_strided_slice %2 {offsets = [2, 0], sizes = [1, 512], strides = [1, 1]} : vector<3x512xf32> to vector<1x512xf32>
    %c1_i32 = arith.constant 1 : i32
    %6 = tpu.dynamic_rotate %1 by %c1_i32 dim 0 : vector<8x512xf32>, i32 -> vector<8x512xf32>
    %c7_i32 = arith.constant 7 : i32
    %7 = tpu.dynamic_rotate %1 by %c7_i32 dim 0 : vector<8x512xf32>, i32 -> vector<8x512xf32>
    %8 = tpu.iota {dimensions = array<i32: 0>} : vector<8x512xi32>
    %c0_i32 = arith.constant 0 : i32
    %9 = vector.broadcast %c0_i32 : i32 to vector<8x512xi32>
    %10 = arith.cmpi eq, %8, %9 : vector<8x512xi32>
    %cst = arith.constant 0.000000e+00 : f32
    %11 = vector.broadcast %cst : f32 to vector<8x512xf32>
    %12 = arith.select %10, %11, %6 : vector<8x512xi1>, vector<8x512xf32>
    %c7_i32_4 = arith.constant 7 : i32
    %13 = vector.broadcast %c7_i32_4 : i32 to vector<8x512xi32>
    %14 = arith.cmpi eq, %8, %13 : vector<8x512xi32>
    %cst_5 = arith.constant 0.000000e+00 : f32
    %15 = vector.broadcast %cst_5 : f32 to vector<8x512xf32>
    %16 = arith.select %14, %15, %7 : vector<8x512xi1>, vector<8x512xf32>
    %17 = vector.broadcast %4 : vector<1x512xf32> to vector<8x512xf32>
    %18 = arith.mulf %17, %1 : vector<8x512xf32>
    %19 = vector.broadcast %3 : vector<1x512xf32> to vector<8x512xf32>
    %20 = arith.mulf %19, %12 : vector<8x512xf32>
    %21 = arith.addf %18, %20 : vector<8x512xf32>
    %22 = vector.broadcast %5 : vector<1x512xf32> to vector<8x512xf32>
    %23 = arith.mulf %22, %16 : vector<8x512xf32>
    %24 = arith.addf %21, %23 : vector<8x512xf32>
    %c0_6 = arith.constant 0 : index
    %c0_7 = arith.constant 0 : index
    %c0_8 = arith.constant 0 : index
    %25 = vector.load %arg4[%c0_6, %c0_7, %c0_8] : memref<1x8x512xf32, #tpu.memory_space<vmem>>, vector<1x8x512xf32>
    %26 = vector.shape_cast %25 : vector<1x8x512xf32> to vector<8x512xf32>
    %27 = vector.shape_cast %24 : vector<8x512xf32> to vector<1x8x512xf32>
    tpu.vector_store %arg4[%c0_6, %c0_7, %c0_8], %27 {strides = array<i32>} : memref<1x8x512xf32, #tpu.memory_space<vmem>>, vector<1x8x512xf32>,
    return
  }
  func.func @transform_0(%arg0: i32, %arg1: i32) -> (i32, i32, i32) {
    %c0_i32 = arith.constant 0 : i32
    %c0_i32_0 = arith.constant 0 : i32
    return %arg1, %c0_i32, %arg0 : i32, i32, i32
  }
  func.func @transform_1(%arg0: i32, %arg1: i32) -> (i32, i32) {
    %c0_i32 = arith.constant 0 : i32
    %c0_i32_0 = arith.constant 0 : i32
    return %c0_i32, %arg0 : i32, i32
  }
  func.func @transform_2(%arg0: i32, %arg1: i32) -> (i32, i32, i32) {
    %c0_i32 = arith.constant 0 : i32
    %c0_i32_0 = arith.constant 0 : i32
    return %arg1, %c0_i32, %arg0 : i32, i32, i32
  }
}

</mosaic_0001>

<llo_original>
// kernel: tpu_custom_call.1
$region0: #{tpu_custom_call.1}
  #allocation0 [shape = 'u32[]', space=smem, size = 0x4, offset = 0x4, fixed_abs, tag = 'smem constant byte address 0x4 - core index']
  #allocation1 [shape = 'u32[144,128]{1,0:T(1,128)}', space=vmem, size = 0x12000, scoped, tag = 'internal scratch']
  %s0 = inlined_call_operand.hbm [shape: f32[2,8,2048], index: 0, kind: input, shape index: {}]
  %s1 = inlined_call_operand.hbm [shape: f32[3,2048], index: 1, kind: input, shape index: {}]
  %s2 = inlined_call_operand.hbm [shape: f32[2,8,2048], index: 2, kind: output, shape index: {}]
  %s3 = sld [smem:[#allocation0]]
  $region49: #{tpu_custom_call.1} parent=0
    _
  %s5 = ssub.s32 1, %s3
  %s6 = scalar_select 0, %s5, %s3
  $region1: #{tpu_custom_call.1} parent=0
    #allocation2 [shape = 'u8[32768]{0}', space=vmem, size = 0x8000, scoped, tag = 'input window, operand 0']
    #allocation3 [shape = 's32[2]{0}', space=sflag, size = 0x8, scoped, tag = 'scoped memory for tpu_custom_call.1']
    #allocation4 [shape = 's32[2]{0}', space=sflag, size = 0x8, scoped, tag = 'scoped memory for tpu_custom_call.1']
    #allocation5 [shape = 'u8[16384]{0}', space=vmem, size = 0x4000, scoped, tag = 'input window, operand 1']
    #allocation6 [shape = 's32[2]{0}', space=sflag, size = 0x8, scoped, tag = 'scoped memory for tpu_custom_call.1']
    #allocation7 [shape = 'u8[32768]{0}', space=vmem, size = 0x8000, scoped, tag = 'output window, operand 0']
    %7 = vsyncpa [#allocation3], 0
    %s8 = scalar_lea.sflag [#allocation3], 1
    %9 = vsyncpa %s8, 0
    %10 = vsyncpa [#allocation6], 0
    %s11 = scalar_lea.sflag [#allocation6], 1
    %12 = vsyncpa %s11, 0
    %13 = vsyncpa [#allocation4], 0
    %s14 = scalar_lea.sflag [#allocation4], 1
    %15 = vsyncpa %s14, 0
    loop: start=0, step=1, limit=10
    $region2: #{tpu_custom_call.1} parent=1 // loop_pre_header
      _
    $region3: #{tpu_custom_call.1} parent=1 // loop_header
      %s17 = sphi 0, %s21
      %p18 = scmp.ge.s32.totalorder %s17, 10
      %s24 = sphi 0, %s36
      %s25 = sphi 0, %s32
      %s26 = sphi 0, %s24
      %s27 = sphi 0, %s25
      %s28 = sphi 0, %s26
      %s29 = sphi 0, %s27
      %s41 = sphi 0, %s43
      %s44 = sphi 0, %s41
      %s45 = sphi 0, %s44
      %s61 = sphi 0, %s45
      %s67 = sphi 0, %s69
      %s70 = sphi 0, %s67
      %s71 = sphi 0, %s70
      %s87 = sphi 0, %s71
      %s95 = sphi 0, %s97
      %s98 = sphi 0, %s95
      %s99 = sphi 0, %s98
      %s115 = sphi 0, %s99
    $region4: #{tpu_custom_call.1} parent=1 // loop_header_branch
      %20 = sbr.rel (%p18) target = $region8
    $region5: #{tpu_custom_call.1} parent=1 // loop_body
      %s22 = ssub.s32 %s17, 1
      %s23 = ssub.s32 %s17, 2
      %s30 = sadd.s32 1, %s25
      %p31 = scmp.ge.s32.totalorder %s30, 2
      %s32 = scalar_select %p31, 0, %s30
      %s33 = sadd.s32 1, %s24
      %s34 = scalar_select %p31, %s33, %s24
      %p35 = scmp.ge.s32.totalorder %s34, 4
      %s36 = scalar_select %p35, 0, %s34
      %s37 = ssub.s32 %s25, %s32
      %s38 = ssub.s32 %s24, %s36
      %s39 = sor.u32 %s37, %s38
      %p40 = scmp.eq.s32.totalorder %s39, 0
      %s42 = sadd.s32 %s41, 1
      %s43 = scalar_select %p40, %s41, %s42
      %p46 = pneg %p40
      %p47 = scmp.eq.s32.totalorder %s17, 7
      %p48 = por %p46, %p47
      %p49 = scmp.ne.s32.totalorder %s41, %s44
      %p50 = scmp.eq.s32.totalorder %s17, 0
      %p51 = por %p49, %p50
      %p52 = scmp.ne.s32.totalorder %s41, %s44
      %p53 = scmp.eq.s32.totalorder %s22, 7
      %p54 = por %p52, %p53
      %p55 = scmp.ne.s32.totalorder %s44, %s45
      %p56 = scmp.eq.s32.totalorder %s22, 0
      %p57 = por %p55, %p56
      %p58 = scmp.ne.s32.totalorder %s44, %s45
      %p59 = scmp.eq.s32.totalorder %s23, 7
      %p60 = por %p58, %p59
      %p62 = scmp.ne.s32.totalorder %s45, %s61
      %p63 = scmp.eq.s32.totalorder %s23, 0
      %p64 = por %p62, %p63
      %s65 = ssub.s32 %s24, %s36
      %p66 = scmp.eq.s32.totalorder %s65, 0
      %s68 = sadd.s32 %s67, 1
      %s69 = scalar_select %p66, %s67, %s68
      %p72 = pneg %p66
      %p73 = scmp.eq.s32.totalorder %s17, 7
      %p74 = por %p72, %p73
      %p75 = scmp.ne.s32.totalorder %s67, %s70
      %p76 = scmp.eq.s32.totalorder %s17, 0
      %p77 = por %p75, %p76
      %p78 = scmp.ne.s32.totalorder %s67, %s70
      %p79 = scmp.eq.s32.totalorder %s22, 7
      %p80 = por %p78, %p79
      %p81 = scmp.ne.s32.totalorder %s70, %s71
      %p82 = scmp.eq.s32.totalorder %s22, 0
      %p83 = por %p81, %p82
      %p84 = scmp.ne.s32.totalorder %s70, %s71
      %p85 = scmp.eq.s32.totalorder %s23, 7
      %p86 = por %p84, %p85
      %p88 = scmp.ne.s32.totalorder %s71, %s87
      %p89 = scmp.eq.s32.totalorder %s23, 0
      %p90 = por %p88, %p89
      %s91 = ssub.s32 %s25, %s32
      %s92 = ssub.s32 %s24, %s36
      %s93 = sor.u32 %s91, %s92
      %p94 = scmp.eq.s32.totalorder %s93, 0
      %s96 = sadd.s32 %s95, 1
      %s97 = scalar_select %p94, %s95, %s96
      %p100 = pneg %p94
      %p101 = scmp.eq.s32.totalorder %s17, 7
      %p102 = por %p100, %p101
      %p103 = scmp.ne.s32.totalorder %s95, %s98
      %p104 = scmp.eq.s32.totalorder %s17, 0
      %p105 = por %p103, %p104
      %p106 = scmp.ne.s32.totalorder %s95, %s98
      %p107 = scmp.eq.s32.totalorder %s22, 7
      %p108 = por %p106, %p107
      %p109 = scmp.ne.s32.totalorder %s98, %s99
      %p110 = scmp.eq.s32.totalorder %s22, 0
      %p111 = por %p109, %p110
      %p112 = scmp.ne.s32.totalorder %s98, %s99
      %p113 = scmp.eq.s32.totalorder %s23, 7
      %p114 = por %p112, %p113
      %p116 = scmp.ne.s32.totalorder %s99, %s115
      %p117 = scmp.eq.s32.totalorder %s23, 0
      %p118 = por %p116, %p117
      %p119 = scmp.le.s32.totalorder 1, %s17
      %p120 = scmp.lt.s32.totalorder %s17, 9
      %p121 = pnand %p119, %p120
      %p122 = pneg %p121
      // Predicated region
      $region9: #{tpu_custom_call.1} parent=5 // pred_check
        _
      $region10: #{tpu_custom_call.1} parent=5 // pred_check_branch
        %124 = sbr.rel (%p121) target = $region12
      $region11: #{tpu_custom_call.1} parent=5 // pred_region
        %s125 = ssub.s32 %s17, 1
      $region12: #{tpu_custom_call.1} parent=5 // pred_fallthru
        _
      %p126 = scmp.lt.s32.totalorder %s17, 8
      // Predicated region
      $region13: #{tpu_custom_call.1} parent=5 // pred_check
        %p127 = pneg %p126
      $region14: #{tpu_custom_call.1} parent=5 // pred_check_branch
        %129 = sbr.rel (%p127) target = $region16
      $region15: #{tpu_custom_call.1} parent=5 // pred_region
        // Predicated region
        $region17: #{tpu_custom_call.1} parent=15 // pred_check
          %p130 = pneg %p51
        $region18: #{tpu_custom_call.1} parent=15 // pred_check_branch
          %132 = sbr.rel (%p130) target = $region20
        $region19: #{tpu_custom_call.1} parent=15 // pred_region
          %s133 = sand.u32 %s41, 1
          %s134 = scalar_lea.sflag [#allocation3], %s133
          %s135 = sand.u32 %s41, 1
          %s136 = smul.addr %s135, 32
          %s137 = scalar_lea.vmem [#allocation2], %s136
          %s138 = smul.u32 4, %s24
          %s140 = ssub.s32 512, 512
          %141 = vsyncadd %s134, %s140
          %s142 = smul.addr %s25, 16
          %s143 = sadd.s32 %s138, %s142
          %s144 = smul.addr %s143, 128
          %s145 = scalar_lea.hbm %s0, %s144
          %s147 = sshll.u32 %s137, 4
          %s148 = int_to_ptr.vmem [resolvable:$true] %s147
          %150 = dma.hbm_to_vmem [thread:$0]  %s145, 512, %s148, %s134
        $region20: #{tpu_custom_call.1} parent=15 // pred_fallthru
          _
        // Predicated region
        $region21: #{tpu_custom_call.1} parent=15 // pred_check
          %p151 = pneg %p77
        $region22: #{tpu_custom_call.1} parent=15 // pred_check_branch
          %153 = sbr.rel (%p151) target = $region24
        $region23: #{tpu_custom_call.1} parent=15 // pred_region
          %s154 = sand.u32 %s67, 1
          %s155 = scalar_lea.sflag [#allocation6], %s154
          %s156 = sand.u32 %s67, 1
          %s157 = smul.addr %s156, 16
          %s158 = scalar_lea.vmem [#allocation5], %s157
          %s159 = smul.u32 4, %s24
          %s161 = ssub.s32 256, 256
          %162 = vsyncadd %s155, %s161
          %s163 = smul.addr %s159, 64
          %s164 = scalar_lea.hbm %s1, %s163
          %s166 = sshll.u32 %s158, 4
          %s167 = int_to_ptr.vmem [resolvable:$true] %s166
          %169 = dma.hbm_to_vmem [thread:$0]  %s164, 256, %s167, %s155
        $region24: #{tpu_custom_call.1} parent=15 // pred_fallthru
          _
      $region16: #{tpu_custom_call.1} parent=5 // pred_fallthru
        _
      %p170 = scmp.le.s32.totalorder 1, %s17
      %p171 = scmp.lt.s32.totalorder %s17, 9
      %p172 = pnand %p170, %p171
      %p173 = pneg %p172
      // Predicated region
      $region25: #{tpu_custom_call.1} parent=5 // pred_check
        _
      $region26: #{tpu_custom_call.1} parent=5 // pred_check_branch
        %175 = sbr.rel (%p172) target = $region28
      $region27: #{tpu_custom_call.1} parent=5 // pred_region
        %s176 = ssub.s32 %s17, 1
        %s177 = sand.u32 %s44, 1
        %s178 = scalar_lea.sflag [#allocation3], %s177
        %s179 = sand.u32 %s44, 1
        %s180 = smul.addr %s179, 32
        %s181 = scalar_lea.vmem [#allocation2], %s180
        // Predicated region
        $region29: #{tpu_custom_call.1} parent=27 // pred_check
          %p182 = pneg %p57
        $region30: #{tpu_custom_call.1} parent=27 // pred_check_branch
          %184 = sbr.rel (%p182) target = $region32
        $region31: #{tpu_custom_call.1} parent=27 // pred_region
          %185 = dma.done %s178, 512
        $region32: #{tpu_custom_call.1} parent=27 // pred_fallthru
          _
        %s186 = sand.u32 %s70, 1
        %s187 = scalar_lea.sflag [#allocation6], %s186
        %s188 = sand.u32 %s70, 1
        %s189 = smul.addr %s188, 16
        %s190 = scalar_lea.vmem [#allocation5], %s189
        // Predicated region
        $region33: #{tpu_custom_call.1} parent=27 // pred_check
          %p191 = pneg %p83
        $region34: #{tpu_custom_call.1} parent=27 // pred_check_branch
          %193 = sbr.rel (%p191) target = $region36
        $region35: #{tpu_custom_call.1} parent=27 // pred_region
          %194 = dma.done %s187, 256
        $region36: #{tpu_custom_call.1} parent=27 // pred_fallthru
          _
        %s195 = sand.u32 %s44, 1
        %s196 = scalar_lea.sflag [#allocation3], %s195
        %s197 = sand.u32 %s44, 1
        %s198 = smul.addr %s197, 32
        %s199 = scalar_lea.vmem [#allocation2], %s198
        %p200 = pneg %p57
        %p201 = pneg %p54
        %s202 = sand.u32 %s70, 1
        %s203 = scalar_lea.sflag [#allocation6], %s202
        %s204 = sand.u32 %s70, 1
        %s205 = smul.addr %s204, 16
        %s206 = scalar_lea.vmem [#allocation5], %s205
        %p207 = pneg %p83
        %p208 = pneg %p80
        %p209 = pneg %p111
        %p210 = pneg %p108
        %s211 = sand.u32 %s98, 1
        %s212 = scalar_lea.sflag [#allocation4], %s211
        %s213 = sand.u32 %s98, 1
        %s214 = smul.addr %s213, 32
        %s215 = scalar_lea.vmem [#allocation7], %s214
        %s216 = smul.u32 4, %s26
        %s217 = smul.u32 4, %s26
        %s218 = smul.u32 4, %s26
        %v219 = vld [vmem:[%s181] sm:$0xff]
        %v220 = vld [vmem:[%s181 + $0x8] sm:$0xff]
        %v221 = vld [vmem:[%s181 + $0x10] sm:$0xff]
        %v222 = vld [vmem:[%s181 + $0x18] sm:$0xff]
        %v223 = vld [vmem:[%s190] sm:$0x77]
        %v224 = vld [vmem:[%s190 + $0x8] sm:$0x77]
        %v225 = vrot.slane %v219, 7
        %v226 = vrot.slane %v220, 7
        %v227 = vrot.slane %v221, 7
        %v228 = vrot.slane %v222, 7
        %v229 = vrot.slane %v219, 1
        %v230 = vrot.slane %v220, 1
        %v231 = vrot.slane %v221, 1
        %v232 = vrot.slane %v222, 1
        %v233 = vlaneseq
        %v234 = vshrl.u32 %v233, 7
        %vm235 = vcmp.eq.s32.totalorder %v234, 0
        %v236 = vsel %vm235, 0.0, %v225
        %v237 = vsel %vm235, 0.0, %v226
        %v238 = vsel %vm235, 0.0, %v227
        %v239 = vsel %vm235, 0.0, %v228
        %vm240 = vcmp.eq.s32.totalorder %v234, 7
        %v241 = vsel %vm240, 0.0, %v229
        %v242 = vsel %vm240, 0.0, %v230
        %v243 = vsel %vm240, 0.0, %v231
        %v244 = vsel %vm240, 0.0, %v232
        %v247 = vlaneseq
        %v248 = vshrl.u32 %v247, 7
        %v249 = vsub.s32 1, %v248
        %v250 = vrot.slane %v223, %v249
        %v251 = vlaneseq
        %v252 = vshrl.u32 %v251, 7
        %v253 = vsub.s32 5, %v252
        %v254 = vrot.slane %v223, %v253
        %v255 = vlaneseq
        %v256 = vshrl.u32 %v255, 7
        %v257 = vsub.s32 1, %v256
        %v258 = vrot.slane %v224, %v257
        %v259 = vlaneseq
        %v260 = vshrl.u32 %v259, 7
        %v261 = vsub.s32 5, %v260
        %v262 = vrot.slane %v224, %v261
        %v267 = vlaneseq
        %v268 = vshrl.u32 %v267, 7
        %v269 = vsub.s32 1, %v268
        %v270 = vrot.slane %v250, %v269
        %v271 = vlaneseq
        %v272 = vshrl.u32 %v271, 7
        %v273 = vsub.s32 1, %v272
        %v274 = vrot.slane %v254, %v273
        %v275 = vlaneseq
        %v276 = vshrl.u32 %v275, 7
        %v277 = vsub.s32 1, %v276
        %v278 = vrot.slane %v258, %v277
        %v279 = vlaneseq
        %v280 = vshrl.u32 %v279, 7
        %v281 = vsub.s32 1, %v280
        %v282 = vrot.slane %v262, %v281
        %v283 = vmul.f32 %v270, %v219
        %v284 = vmul.f32 %v274, %v220
        %v285 = vmul.f32 %v278, %v221
        %v286 = vmul.f32 %v282, %v222
        %v287 = vlaneseq
        %v288 = vshrl.u32 %v287, 7
        %v289 = vsub.s32 0, %v288
        %v290 = vrot.slane %v223, %v289
        %v291 = vlaneseq
        %v292 = vshrl.u32 %v291, 7
        %v293 = vsub.s32 4, %v292
        %v294 = vrot.slane %v223, %v293
        %v295 = vlaneseq
        %v296 = vshrl.u32 %v295, 7
        %v297 = vsub.s32 0, %v296
        %v298 = vrot.slane %v224, %v297
        %v299 = vlaneseq
        %v300 = vshrl.u32 %v299, 7
        %v301 = vsub.s32 4, %v300
        %v302 = vrot.slane %v224, %v301
        %v307 = vlaneseq
        %v308 = vshrl.u32 %v307, 7
        %v309 = vsub.s32 0, %v308
        %v310 = vrot.slane %v290, %v309
        %v311 = vlaneseq
        %v312 = vshrl.u32 %v311, 7
        %v313 = vsub.s32 0, %v312
        %v314 = vrot.slane %v294, %v313
        %v315 = vlaneseq
        %v316 = vshrl.u32 %v315, 7
        %v317 = vsub.s32 0, %v316
        %v318 = vrot.slane %v298, %v317
        %v319 = vlaneseq
        %v320 = vshrl.u32 %v319, 7
        %v321 = vsub.s32 0, %v320
        %v322 = vrot.slane %v302, %v321
        %v323 = vmul.f32 %v310, %v236
        %v324 = vmul.f32 %v314, %v237
        %v325 = vmul.f32 %v318, %v238
        %v326 = vmul.f32 %v322, %v239
        %v327 = vadd.f32 %v283, %v323
        %v328 = vadd.f32 %v284, %v324
        %v329 = vadd.f32 %v285, %v325
        %v330 = vadd.f32 %v286, %v326
        %v331 = vlaneseq
        %v332 = vshrl.u32 %v331, 7
        %v333 = vsub.s32 2, %v332
        %v334 = vrot.slane %v223, %v333
        %v335 = vlaneseq
        %v336 = vshrl.u32 %v335, 7
        %v337 = vsub.s32 6, %v336
        %v338 = vrot.slane %v223, %v337
        %v339 = vlaneseq
        %v340 = vshrl.u32 %v339, 7
        %v341 = vsub.s32 2, %v340
        %v342 = vrot.slane %v224, %v341
        %v343 = vlaneseq
        %v344 = vshrl.u32 %v343, 7
        %v345 = vsub.s32 6, %v344
        %v346 = vrot.slane %v224, %v345
        %v351 = vlaneseq
        %v352 = vshrl.u32 %v351, 7
        %v353 = vsub.s32 2, %v352
        %v354 = vrot.slane %v334, %v353
        %v355 = vlaneseq
        %v356 = vshrl.u32 %v355, 7
        %v357 = vsub.s32 2, %v356
        %v358 = vrot.slane %v338, %v357
        %v359 = vlaneseq
        %v360 = vshrl.u32 %v359, 7
        %v361 = vsub.s32 2, %v360
        %v362 = vrot.slane %v342, %v361
        %v363 = vlaneseq
        %v364 = vshrl.u32 %v363, 7
        %v365 = vsub.s32 2, %v364
        %v366 = vrot.slane %v346, %v365
        %v367 = vmul.f32 %v354, %v241
        %v368 = vmul.f32 %v358, %v242
        %v369 = vmul.f32 %v362, %v243
        %v370 = vmul.f32 %v366, %v244
        %v371 = vadd.f32 %v327, %v367
        %v372 = vadd.f32 %v328, %v368
        %v373 = vadd.f32 %v329, %v369
        %v374 = vadd.f32 %v330, %v370
        %375 = vst [vmem:[%s215] sm:$0xff] %v371
        %376 = vst [vmem:[%s215 + $0x8] sm:$0xff] %v372
        %377 = vst [vmem:[%s215 + $0x10] sm:$0xff] %v373
        %378 = vst [vmem:[%s215 + $0x18] sm:$0xff] %v374
        %s379 = sand.u32 %s98, 1
        %s380 = scalar_lea.sflag [#allocation4], %s379
        %s381 = sand.u32 %s98, 1
        %s382 = smul.addr %s381, 32
        %s383 = scalar_lea.vmem [#allocation7], %s382
        // Predicated region
        $region37: #{tpu_custom_call.1} parent=27 // pred_check
          %p384 = pneg %p108
        $region38: #{tpu_custom_call.1} parent=27 // pred_check_branch
          %386 = sbr.rel (%p384) target = $region40
        $region39: #{tpu_custom_call.1} parent=27 // pred_region
          %s387 = smul.u32 4, %s26
          %s389 = ssub.s32 512, 512
          %390 = vsyncadd %s380, %s389
          %s391 = smul.addr %s27, 16
          %s392 = sadd.s32 %s387, %s391
          %s393 = smul.addr %s392, 128
          %s394 = scalar_lea.hbm %s2, %s393
          %s396 = sshll.u32 %s383, 4
          %s397 = int_to_ptr.vmem [resolvable:$true] %s396
          %399 = dma.vmem_to_hbm [thread:$0]  %s397, 512, %s394, %s380
        $region40: #{tpu_custom_call.1} parent=27 // pred_fallthru
          _
      $region28: #{tpu_custom_call.1} parent=5 // pred_fallthru
        _
      %p400 = scmp.le.s32.totalorder 2, %s17
      // Predicated region
      $region41: #{tpu_custom_call.1} parent=5 // pred_check
        %p401 = pneg %p400
      $region42: #{tpu_custom_call.1} parent=5 // pred_check_branch
        %403 = sbr.rel (%p401) target = $region44
      $region43: #{tpu_custom_call.1} parent=5 // pred_region
        %s404 = ssub.s32 %s17, 2
        // Predicated region
        $region45: #{tpu_custom_call.1} parent=43 // pred_check
          %p405 = pneg %p114
        $region46: #{tpu_custom_call.1} parent=43 // pred_check_branch
          %407 = sbr.rel (%p405) target = $region48
        $region47: #{tpu_custom_call.1} parent=43 // pred_region
          %s408 = sand.u32 %s99, 1
          %s409 = scalar_lea.sflag [#allocation4], %s408
          %s410 = sand.u32 %s99, 1
          %s411 = smul.addr %s410, 32
          %s412 = scalar_lea.vmem [#allocation7], %s411
          %413 = dma.done %s409, 512
        $region48: #{tpu_custom_call.1} parent=43 // pred_fallthru
          _
      $region44: #{tpu_custom_call.1} parent=5 // pred_fallthru
        _
    $region6: #{tpu_custom_call.1} parent=1 // loop_footer
      %s21 = sadd.s32 1, %s17
    $region7: #{tpu_custom_call.1} parent=1 // loop_footer_branch
      %16 = sbr.rel target = $region3
    $region8: #{tpu_custom_call.1} parent=1 // loop_exit
      _
    %414 = vsyncpa [#allocation3], 1
    %s415 = scalar_lea.sflag [#allocation3], 1
    %416 = vsyncpa %s415, 1
    %417 = vsyncpa [#allocation6], 1
    %s418 = scalar_lea.sflag [#allocation6], 1
    %419 = vsyncpa %s418, 1
    %420 = vsyncpa [#allocation4], 1
    %s421 = scalar_lea.sflag [#allocation4], 1
    %422 = vsyncpa %s421, 1

</llo_original>
